<compile_context>
chip_gen: v6e
topology: v6e:2x2x1
jax: 0.10.0
libtpu: 0.0.40
codegen_flags: <defaults>
</compile_context>

<pallas_src>
import functools

import jax
import jax.numpy as jnp
from jax import lax
from jax.experimental import pallas as pl
from jax.experimental.pallas import tpu as pltpu

BN_EPS = 4e-5  # nn.BatchNorm2d(..., eps=4e-05)


# --------------------------------------------------------------------------- #
# pltpu.roll convention probe (defensive: pins the rotate direction at runtime)
# --------------------------------------------------------------------------- #
@functools.lru_cache(maxsize=None)
def _roll_dir() -> int:
    """+1 if pltpu.roll matches jnp.roll (positive shift moves data toward
    higher lane indices), -1 otherwise.  One tiny probe kernel, cached."""
    def probe(x_ref, o_ref):
        o_ref[...] = pltpu.roll(x_ref[...], 1, axis=1)

    with jax.ensure_compile_time_eval():
        x = lax.broadcasted_iota(jnp.float32, (8, 128), 1)
        y = pl.pallas_call(
            probe, out_shape=jax.ShapeDtypeStruct((8, 128), jnp.float32))(x)
        return 1 if abs(float(y[0, 1])) < 0.5 else -1


# --------------------------------------------------------------------------- #
# fused kernel: conv+stats (phase 0), BN finalize + apply + ReLU (phase 1)
# --------------------------------------------------------------------------- #
def _fused_kernel(x_ref, masks_ref, wdw_ref, wbd_ref, vecs_ref, o_ref,
                  y_buf, shift_ref, sum_ref, sq_ref, scale_ref, bias_ref,
                  *, H, W, C, Nb, count, roll_dir, eps):
    phase = pl.program_id(0)
    n = pl.program_id(1)
    HW = H * W

    @pl.when(phase == 0)
    def _compute_and_stats():
        x = x_ref[...].astype(jnp.float32)
        wdw = wdw_ref[...]

        def lshift(v, off):
            # shifted[p] == v[p + off]; wrap-around is masked by the caller.
            return pltpu.roll(v, (-roll_dir * off) % HW, axis=1)

        left_ok = masks_ref[0:1, :]      # column w-1 exists
        right_ok = masks_ref[1:2, :]     # column w+1 exists
        up_ok = masks_ref[2:3, :]        # row h-1 exists
        down_ok = masks_ref[3:4, :]      # row h+1 exists

        # Two W-shifted copies built once, reused by all three kernel rows.
        x_l = lshift(x, -1) * left_ok    # x[h, w-1]
        x_r = lshift(x, +1) * right_ok   # x[h, w+1]

        def dw_row(kh):
            return (wdw[:, 3 * kh + 0:3 * kh + 1] * x_l
                    + wdw[:, 3 * kh + 1:3 * kh + 2] * x
                    + wdw[:, 3 * kh + 2:3 * kh + 3] * x_r)

        acc = dw_row(1)                                # centre row, no shift
        acc = acc + lshift(dw_row(0), -W) * up_ok      # contribution from h-1
        acc = acc + lshift(dw_row(2), +W) * down_ok    # contribution from h+1
        d = acc + vecs_ref[:, 0:1]                     # depthwise bias

        # Pointwise 1x1 conv: block-diagonal (per-sample C x C blocks) MXU dot.
        # TODO(synk): for large C use Nb=1 and a plain (C,C) MXU dot (bf16
        # inputs on v6e/v7x) instead of the zero-padded block-diagonal weight.
        y = jnp.dot(wbd_ref[...], d, preferred_element_type=jnp.float32)
        y = y + vecs_ref[:, 1:2]                       # pointwise bias

        y_buf[n] = y                                   # keep resident in VMEM

        @pl.when(n == 0)
        def _init_stats():
            # Per-channel mean estimate from this first block -> shift for the
            # sum-of-squares (numerically safe variance).
            m = jnp.sum(y, axis=1, keepdims=True) * (1.0 / HW)
            t = m
            for s in range(1, Nb):
                t = t + pltpu.roll(m, s * C, axis=0)
            shift_ref[...] = t * (1.0 / Nb)
            sum_ref[...] = jnp.zeros_like(sum_ref)
            sq_ref[...] = jnp.zeros_like(sq_ref)

        yc = y - shift_ref[...]
        sum_ref[...] += jnp.sum(yc, axis=1, keepdims=True)
        sq_ref[...] += jnp.sum(yc * yc, axis=1, keepdims=True)

    @pl.when(phase == 1)
    def _bn_relu_apply():
        @pl.when(n == 0)
        def _finalize_bn():
            s_acc = sum_ref[...]
            q_acc = sq_ref[...]
            tot_s, tot_q = s_acc, q_acc
            # Fold the Nb sample-slot rows of each channel together; rolling by
            # multiples of C keeps channel congruence, so every row ends up
            # holding its channel's total (no reshape / re-broadcast needed).
            for s in range(1, Nb):
                tot_s = tot_s + pltpu.roll(s_acc, s * C, axis=0)
                tot_q = tot_q + pltpu.roll(q_acc, s * C, axis=0)
            inv_cnt = 1.0 / count
            mean_c = tot_s * inv_cnt                       # E[y - shift]
            var_c = tot_q * inv_cnt - mean_c * mean_c      # Var(y), shifted
            gamma = vecs_ref[:, 2:3]
            beta = vecs_ref[:, 3:4]
            scale = gamma * lax.rsqrt(var_c + eps)
            scale_ref[...] = scale
            bias_ref[...] = beta - (mean_c + shift_ref[...]) * scale

        y = y_buf[n]
        o_ref[...] = jnp.maximum(
            y * scale_ref[...] + bias_ref[...], 0.0).astype(o_ref.dtype)


# --------------------------------------------------------------------------- #
# wrapper
# --------------------------------------------------------------------------- #
def _choose_nb(N, C, HW, itemsize=4, target_block_bytes=2 << 20):
    """Largest Nb dividing N with Nb*C a multiple of 8 and block <= ~2 MiB."""
    best = None
    for nb in range(1, N + 1):
        if N % nb != 0:
            continue
        rows = nb * C
        if rows % 8 != 0:
            continue
        if rows * HW * itemsize <= target_block_bytes:
            best = nb
    # Fallback: whole-batch block (block_shape == full array dims is legal).
    return best if best is not None else N


def conv_block(x, wdw, bdw, wpw, bpw, gamma, beta, *, io_dtype=None):
    """ConvBlock forward (training-mode BatchNorm batch statistics).

    x:     (N, C, H, W) float32
    wdw:   (C, 1, 3, 3) depthwise conv weight (torch layout)
    bdw:   (C,)         depthwise conv bias
    wpw:   (C, C, 1, 1) pointwise conv weight (torch layout, [out, in, 1, 1])
    bpw:   (C,)         pointwise conv bias
    gamma: (C,)         BatchNorm weight
    beta:  (C,)         BatchNorm bias
    io_dtype: dtype used to ship x / out over HBM.  Pass jnp.bfloat16 on
              v6e/v7x to halve HBM bytes (accumulation stays f32).
    """
    N, C, H, W = x.shape
    HW = H * W
    io_dtype = jnp.dtype(io_dtype) if io_dtype is not None else jnp.dtype(x.dtype)
    roll_dir = _roll_dir()

    Nb = _choose_nb(N, C, HW, io_dtype.itemsize)
    nblocks = N // Nb
    R = Nb * C

    # --- host-side packing (tiny, runs once in XLA; no transpose of x) -------
    x2d = x.reshape(N * C, HW).astype(io_dtype)          # row-major view
    wdw_rows = jnp.tile(wdw.reshape(C, 9).astype(jnp.float32), (Nb, 1))
    wbd = jnp.kron(jnp.eye(Nb, dtype=jnp.float32),
                   wpw.reshape(C, C).astype(jnp.float32))          # (R, R)
    vecs = jnp.tile(jnp.stack([bdw, bpw, gamma, beta], axis=1)
                    .astype(jnp.float32), (Nb, 1))                 # (R, 4)

    lane = jnp.arange(HW, dtype=jnp.int32)
    w_pos, h_pos = lane % W, lane // W
    masks = jnp.stack([w_pos >= 1, w_pos <= W - 2,
                       h_pos >= 1, h_pos <= H - 2]).astype(jnp.float32)  # (4,HW)

    # --- VMEM budget (resident y for the whole batch) -------------------------
    y_buf_bytes = nblocks * R * HW * 4
    blk_bytes = R * HW * io_dtype.itemsize
    vmem_need = (y_buf_bytes + 4 * blk_bytes
                 + 4 * (R * 9 + R * R + R * 4 + 4 * HW + 6 * R) + (1 << 20))
    VMEM_BUDGET = 48 * 1024 * 1024     # conservative vs v7x's 64 MiB physical
    # TODO(synk): when the whole-batch y no longer fits (large N*H*W), fall back
    # to a two-pass scheme (stats pass + apply pass with an HBM y round trip),
    # and for large H*W add an H-row block axis with a 1-row halo.
    assert vmem_need <= VMEM_BUDGET, (
        f"resident-y scheme needs {vmem_need} B VMEM > {VMEM_BUDGET} B budget")
    vmem_limit = int(min(max(2 * vmem_need, 16 * 1024 * 1024), VMEM_BUDGET))

    flops = N * C * HW * 2 * 9 + nblocks * 2 * R * R * HW + 3 * N * C * HW
    bytes_accessed = (2 * N * C * HW * io_dtype.itemsize
                      + 4 * (R * 9 + R * R + R * 4 + 4 * HW))

    const_idx = lambda p, n: (0, 0)
    nb_last = nblocks - 1
    # x only advances during phase 0 (no re-fetch during the apply phase);
    # out only advances during phase 1 (no garbage write-backs during stats).
    x_idx = lambda p, n: (jnp.where(p == 0, n, nb_last), 0)
    o_idx = lambda p, n: (jnp.where(p == 1, n, 0), 0)

    out2d = pl.pallas_call(
        functools.partial(_fused_kernel, H=H, W=W, C=C, Nb=Nb,
                          count=float(N * HW), roll_dir=roll_dir, eps=BN_EPS),
        grid=(2, nblocks),
        in_specs=[pl.BlockSpec((R, HW), x_idx),
                  pl.BlockSpec((4, HW), const_idx),
                  pl.BlockSpec((R, 9), const_idx),
                  pl.BlockSpec((R, R), const_idx),
                  pl.BlockSpec((R, 4), const_idx)],
        out_specs=pl.BlockSpec((R, HW), o_idx),
        out_shape=jax.ShapeDtypeStruct((N * C, HW), io_dtype),
        scratch_shapes=[pltpu.VMEM((nblocks, R, HW), jnp.float32),  # resident y
                        pltpu.VMEM((R, 1), jnp.float32),            # shift
                        pltpu.VMEM((R, 1), jnp.float32),            # sum
                        pltpu.VMEM((R, 1), jnp.float32),            # sumsq
                        pltpu.VMEM((R, 1), jnp.float32),            # bn scale
                        pltpu.VMEM((R, 1), jnp.float32)],           # bn bias
        compiler_params=pltpu.CompilerParams(
            # Both axes are sequential (phase 1 depends on phase-0 stats).
            # TODO(synk): v7x dual-TC variant via pl.core_map + CMEM partials.
            dimension_semantics=("arbitrary", "arbitrary"),
            vmem_limit_bytes=vmem_limit),
        cost_estimate=pl.CostEstimate(flops=int(flops), transcendentals=0,
                                      bytes_accessed=int(bytes_accessed)),
    )(x2d, masks, wdw_rows, wbd, vecs)

    # TODO(synk): training-mode BatchNorm also updates running_mean/running_var
    # (momentum=0.9997, unbiased var); that stateful side effect is not part of
    # this functional forward output.
    return out2d.reshape(N, C, H, W)


# --------------------------------------------------------------------------- #
# pure-JAX reference (same math as the PyTorch module forward, training mode)
# --------------------------------------------------------------------------- #
def _reference(x, wdw, bdw, wpw, bpw, gamma, beta):
    N, C, H, W = x.shape
    dn = ("NCHW", "OIHW", "NCHW")
    hp = lax.Precision.HIGHEST
    d = lax.conv_general_dilated(x, wdw, (1, 1), ((1, 1), (1, 1)),
                                 dimension_numbers=dn, feature_group_count=C,
                                 precision=hp)
    d = d + bdw.reshape(1, C, 1, 1)
    y = lax.conv_general_dilated(d, wpw, (1, 1), ((0, 0), (0, 0)),
                                 dimension_numbers=dn, precision=hp)
    y = y + bpw.reshape(1, C, 1, 1)
    mean = jnp.mean(y, axis=(0, 2, 3), keepdims=True)
    var = jnp.mean(jnp.square(y - mean), axis=(0, 2, 3), keepdims=True)
    y = (y - mean) * lax.rsqrt(var + BN_EPS)
    y = y * gamma.reshape(1, C, 1, 1) + beta.reshape(1, C, 1, 1)
    return jnp.maximum(y, 0.0)


if __name__ == "__main__":
    key = jax.random.PRNGKey(0)
    N, C, H, W = 2, 4, 16, 16
    ks = jax.random.split(key, 7)

    x = jax.random.normal(ks[0], (N, C, H, W), jnp.float32)
    wdw = 0.3 * jax.random.normal(ks[1], (C, 1, 3, 3), jnp.float32)
    bdw = 0.1 * jax.random.normal(ks[2], (C,), jnp.float32)
    wpw = 0.3 * jax.random.normal(ks[3], (C, C, 1, 1), jnp.float32)
    bpw = 0.1 * jax.random.normal(ks[4], (C,), jnp.float32)
    gamma = 1.0 + 0.1 * jax.random.normal(ks[5], (C,), jnp.float32)
    beta = 0.1 * jax.random.normal(ks[6], (C,), jnp.float32)

    out = jax.block_until_ready(conv_block(x, wdw, bdw, wpw, bpw, gamma, beta))
    assert out.shape == (N, C, H, W)

    ref = jax.block_until_ready(_reference(x, wdw, bdw, wpw, bpw, gamma, beta))
    err = float(jnp.max(jnp.abs(out - ref)))
    assert err < 1e-3, f"max abs error vs reference: {err}"

    print("KERNEL_OK")
</pallas_src>

<mosaic_0001>
module attributes {stable_mosaic.version = 11 : i64} {
  func.func @probe(%arg0: memref<8x128xf32, #tpu.memory_space<vmem>>, %arg1: memref<8x128xf32, #tpu.memory_space<vmem>>) attributes {dimension_semantics = [], scalar_prefetch = 0 : i64, scratch_operands = 0 : i64, tpu.core_type = #tpu.core_type<tc>} {
    %c0 = arith.constant 0 : index
    %c0_0 = arith.constant 0 : index
    %0 = vector.load %arg0[%c0, %c0_0] : memref<8x128xf32, #tpu.memory_space<vmem>>, vector<8x128xf32>
    %c1_i32 = arith.constant 1 : i32
    %1 = tpu.dynamic_rotate %0 by %c1_i32 dim 1 : vector<8x128xf32>, i32 -> vector<8x128xf32>
    %c0_1 = arith.constant 0 : index
    %c0_2 = arith.constant 0 : index
    %2 = vector.load %arg1[%c0_1, %c0_2] : memref<8x128xf32, #tpu.memory_space<vmem>>, vector<8x128xf32>
    tpu.vector_store %arg1[%c0_1, %c0_2], %1 {strides = array<i32>} : memref<8x128xf32, #tpu.memory_space<vmem>>, vector<8x128xf32>,
    return
  }
}

</mosaic_0001>

<llo_original>
// kernel: tpu_custom_call.1
$region0: #{tpu_custom_call.1}
  #allocation0 [shape = 'u32[]', space=smem, size = 0x4, offset = 0x4, fixed_abs, tag = 'smem constant byte address 0x4 - core index']
  #allocation1 [shape = 'u32[144,128]{1,0:T(1,128)}', space=vmem, size = 0x12000, scoped, tag = 'internal scratch']
  %s0 = inlined_call_operand.hbm [shape: f32[8,128], index: 0, kind: input, shape index: {}]
  %s1 = inlined_call_operand.hbm [shape: f32[8,128], index: 1, kind: output, shape index: {}]
  %s2 = sld [smem:[#allocation0]]
  $region18: #{tpu_custom_call.1} parent=0
    _
  %s4 = ssub.s32 1, %s2
  %s5 = scalar_select 0, %s4, %s2
  $region1: #{tpu_custom_call.1} parent=0
    #allocation2 [shape = 'u8[4096]{0}', space=vmem, size = 0x1000, scoped, tag = 'input window, operand 0, single buffered']
    #allocation3 [shape = 's32[1]{0}', space=sflag, size = 0x4, scoped, tag = 'scoped memory for tpu_custom_call.1']
    #allocation4 [shape = 's32[1]{0}', space=sflag, size = 0x4, scoped, tag = 'scoped memory for tpu_custom_call.1']
    #allocation5 [shape = 'u8[4096]{0}', space=vmem, size = 0x1000, scoped, tag = 'output window, operand 0, single buffered']
    %6 = vsyncpa [#allocation3], 0
    %7 = vsyncpa [#allocation4], 0
    // Predicated region
    $region2: #{tpu_custom_call.1} parent=1 // pred_check
      _
    $region3: #{tpu_custom_call.1} parent=1 // pred_check_branch
      %9 = sbr.rel (0) target = $region5
    $region4: #{tpu_custom_call.1} parent=1 // pred_region
      %s11 = ssub.s32 128, 128
      %12 = vsyncadd [#allocation3], %s11
      %s14 = sshll.u32 [#allocation2], 4
      %s15 = int_to_ptr.vmem [resolvable:$true] %s14
      %17 = dma.hbm_to_vmem [thread:$0]  %s0, 128, %s15, [#allocation3]
    $region5: #{tpu_custom_call.1} parent=1 // pred_fallthru
      _
    // Predicated region
    $region6: #{tpu_custom_call.1} parent=1 // pred_check
      _
    $region7: #{tpu_custom_call.1} parent=1 // pred_check_branch
      %19 = sbr.rel (0) target = $region9
    $region8: #{tpu_custom_call.1} parent=1 // pred_region
      %20 = dma.done [#allocation3], 128
    $region9: #{tpu_custom_call.1} parent=1 // pred_fallthru
      _
    %v21 = vld [vmem:[#allocation2] sm:$0xff]
    %22 = vrot.lane.b32.xlu0 %v21, 1
    %v23 = vpop.permute.xlu0 %22
    %24 = vst [vmem:[#allocation5] sm:$0xff] %v23
    // Predicated region
    $region10: #{tpu_custom_call.1} parent=1 // pred_check
      _
    $region11: #{tpu_custom_call.1} parent=1 // pred_check_branch
      %26 = sbr.rel (0) target = $region13
    $region12: #{tpu_custom_call.1} parent=1 // pred_region
      %s28 = ssub.s32 128, 128
      %29 = vsyncadd [#allocation4], %s28
      %s31 = sshll.u32 [#allocation5], 4
      %s32 = int_to_ptr.vmem [resolvable:$true] %s31
      %34 = dma.vmem_to_hbm [thread:$0]  %s32, 128, %s1, [#allocation4]
    $region13: #{tpu_custom_call.1} parent=1 // pred_fallthru
      _
    // Predicated region
    $region14: #{tpu_custom_call.1} parent=1 // pred_check
      _
    $region15: #{tpu_custom_call.1} parent=1 // pred_check_branch
      %36 = sbr.rel (0) target = $region17
    $region16: #{tpu_custom_call.1} parent=1 // pred_region
      %37 = dma.done [#allocation4], 128
    $region17: #{tpu_custom_call.1} parent=1 // pred_fallthru
      _
    %38 = vsyncpa [#allocation3], 1
    %39 = vsyncpa [#allocation4], 1

</llo_original>
